<compile_context>
chip_gen: v6e
topology: v6e:2x2x1
jax: 0.10.0
libtpu: 0.0.40
codegen_flags: <defaults>
</compile_context>

<pallas_src>
import math

import jax
import jax.numpy as jnp
from jax.experimental import pallas as pl
from jax.experimental.pallas import tpu as pltpu


# ----------------------------------------------------------------------------
# Kernel
# ----------------------------------------------------------------------------
def _make_pe_kernel(k: int, tile_r: int):
    """Kernel writing one (tile_r, W) slab of the packed PE table.

    col_ref: (3, W) f32, resident across grid steps:
        row 0: inv_freq per column          exp(-2i * ln(1e4)/d_model)
        row 1: packed position offset       c // d_model  in [0, k)
        row 2: cos selector (1.0 on odd feature columns, else 0.0)
    """

    def pe_kernel(col_ref, o_ref):
        inv_freq = col_ref[0:1, :]            # (1, W)
        pos_off = col_ref[1:2, :]             # (1, W)
        use_cos = col_ref[2:3, :] > 0.5       # (1, W) bool

        # Base position of each packed row in this tile: (tile_r, 1).
        r0 = pl.program_id(0) * tile_r
        base = (jax.lax.broadcasted_iota(jnp.int32, (tile_r, 1), 0) + r0) * k
        # Exact integer position (base + offset both exact in f32), then a single
        # multiply — identical rounding to the PyTorch reference position*div_term.
        position = base.astype(jnp.float32) + pos_off        # (tile_r, W)
        angle = position * inv_freq

        # Direct cos on odd feature columns (exact), sin on even columns.
        o_ref[...] = jnp.where(use_cos, jnp.cos(angle), jnp.sin(angle))

    return pe_kernel


# ----------------------------------------------------------------------------
# Tiling / packing choices
# ----------------------------------------------------------------------------
_TILE_BYTE_BUDGET = 6 * 1024 * 1024   # per output tile; x2 double-buffered fits v5e's 16 MiB


def _round_up(a: int, m: int) -> int:
    return ((a + m - 1) // m) * m


def _choose_tiling(R: int, W: int):
    """Pick (tile_r, n_steps) for an (R, W) f32 output table."""
    bytes_per_row = W * 4
    tile_r = max(8, (_TILE_BYTE_BUDGET // bytes_per_row) // 8 * 8)

    if R < 16:
        # Too few rows to split into multiple >=8-row blocks: single full block.
        return R, 1

    n_steps = pl.cdiv(R, tile_r)
    # Keep >=2 (prefer 4, even) parallel grid steps so v7x's 2 TensorCores share
    # the work and compute overlaps writeback.
    min_steps = 4 if R >= 32 else 2
    n_steps = max(n_steps, min_steps)
    if n_steps % 2:
        n_steps += 1
    tile_r = _round_up(pl.cdiv(R, n_steps), 8)
    n_steps = pl.cdiv(R, tile_r)
    return tile_r, n_steps


def _packing_factor(d_model: int) -> int:
    """Fold k consecutive positions into one stored row so the lane dim is a
    multiple of 128 (unmasked vector stores)."""
    if d_model % 128 == 0:
        return 1
    k = math.lcm(d_model, 128) // d_model
    if k * d_model > 32768:
        # TODO(synk): extremely wide packing; fall back to masked partial stores.
        return 1
    return k


# ----------------------------------------------------------------------------
# Wrapper
# ----------------------------------------------------------------------------
def sinusoidal_positional_embedding(seq_len: int, d_model: int) -> jax.Array:
    """Compute the PE table -> (1, seq_len, d_model) float32 via Pallas."""
    assert d_model % 2 == 0, "d_model must be even (as in the PyTorch reference)"

    k = _packing_factor(d_model)
    W = k * d_model
    R = pl.cdiv(seq_len, k)            # packed rows (padded; extras sliced off below)
    tile_r, n_steps = _choose_tiling(R, W)

    # ---- hoisted per-column table: (3, W), computed once in the wrapper ----
    div_term = jnp.exp(
        jnp.arange(0, d_model, 2, dtype=jnp.float32) * (-math.log(10000.0) / d_model)
    )                                                         # (d_model/2,)
    inv_freq_row = jnp.repeat(div_term, 2)                    # (d_model,)
    odd_row = jnp.tile(jnp.array([0.0, 1.0], jnp.float32), d_model // 2)
    inv_freq_full = jnp.tile(inv_freq_row, k)                 # (W,)
    odd_full = jnp.tile(odd_row, k)                           # (W,)
    pos_off_full = jnp.repeat(jnp.arange(k, dtype=jnp.float32), d_model)  # (W,)
    col_tbl = jnp.stack([inv_freq_full, pos_off_full, odd_full], axis=0)  # (3, W)

    kernel = _make_pe_kernel(k, tile_r)
    pe2d = pl.pallas_call(
        kernel,
        out_shape=jax.ShapeDtypeStruct((R, W), jnp.float32),
        grid=(n_steps,),
        in_specs=[pl.BlockSpec((3, W), lambda i: (0, 0))],       # resident across steps
        out_specs=pl.BlockSpec((tile_r, W), lambda i: (i, 0)),
        compiler_params=pltpu.CompilerParams(
            dimension_semantics=("parallel",)),
    )(col_tbl)

    # Free (row-major contiguous) reshape back to (positions, d_model); drop the
    # padded positions introduced by packing; add leading batch-1 dim.
    pe = pe2d.reshape(R * k, d_model)[:seq_len]
    return pe[None, :, :]


class SinusoidalPositionalEmbedding:
    """JAX/Pallas port of the PyTorch module: builds the buffer once, slices on call."""

    def __init__(self, context_len: int, d_model: int):
        self.context_len = context_len
        self.d_model = d_model
        self.pe = sinusoidal_positional_embedding(context_len, d_model)

    def __call__(self, x: jax.Array) -> jax.Array:
        return self.pe[:, : x.shape[1]]


# ----------------------------------------------------------------------------
# Pure-JAX reference (mirrors the PyTorch __init__ math)
# ----------------------------------------------------------------------------
def _reference_pe(seq_len: int, d_model: int) -> jnp.ndarray:
    position = jnp.arange(seq_len, dtype=jnp.float32)[:, None]
    div_term = jnp.exp(
        jnp.arange(0, d_model, 2, dtype=jnp.float32) * (-math.log(10000.0) / d_model)
    )
    pe = jnp.zeros((seq_len, d_model), dtype=jnp.float32)
    pe = pe.at[:, 0::2].set(jnp.sin(position * div_term))
    pe = pe.at[:, 1::2].set(jnp.cos(position * div_term))
    return pe[None]


if __name__ == "__main__":
    # Case 1: small — exercises lane-dense packing (d_model=32 -> k=4, W=128),
    # single full-array block.
    context_len, d_model = 8, 32
    batch, seq = 2, 8
    key = jax.random.PRNGKey(0)
    x = jax.random.normal(key, (batch, seq, d_model), dtype=jnp.float32)

    module = SinusoidalPositionalEmbedding(context_len, d_model)
    out = jax.block_until_ready(module(x))
    ref = _reference_pe(seq, d_model)
    assert out.shape == (1, seq, d_model), out.shape
    assert out.dtype == jnp.float32
    assert jnp.allclose(out, ref, atol=1e-4, rtol=1e-5), float(jnp.max(jnp.abs(out - ref)))

    # Case 2: d_model=192 -> k=2, seq not divisible by k (padded packing),
    # 4-step parallel grid with ragged last block; query shorter than context.
    mod2 = SinusoidalPositionalEmbedding(257, 192)
    out2 = jax.block_until_ready(mod2(jnp.zeros((1, 200, 192), jnp.float32)))
    ref2 = _reference_pe(200, 192)
    assert out2.shape == (1, 200, 192)
    assert jnp.allclose(out2, ref2, atol=1e-4, rtol=1e-5)

    # Case 3: k=1 path (d_model multiple of 128), multi-tile ragged grid, exact cos
    # at larger positions (no sin(x+pi/2) drift).
    mod3 = SinusoidalPositionalEmbedding(1000, 256)
    out3 = jax.block_until_ready(mod3(jnp.zeros((1, 1000, 256), jnp.float32)))
    ref3 = _reference_pe(1000, 256)
    assert out3.shape == (1, 1000, 256)
    assert jnp.allclose(out3, ref3, atol=2e-4, rtol=1e-5)

    print("KERNEL_OK")
</pallas_src>

<mosaic_0001>
module attributes {stable_mosaic.version = 11 : i64} {
  func.func @pe_kernel(%arg0: i32, %arg1: memref<3x128xf32, #tpu.memory_space<vmem>>, %arg2: memref<2x128xf32, #tpu.memory_space<vmem>>) attributes {dimension_semantics = [#tpu.dimension_semantics<parallel>], iteration_bounds = array<i64: 1>, scalar_prefetch = 0 : i64, scratch_operands = 0 : i64, tpu.core_type = #tpu.core_type<tc>, window_params = [{pipeline_mode = #tpu.pipeline_mode<synchronous>, transform_indices = @transform_0, window_bounds = array<i64: 3, 128>}, {transform_indices = @transform_1, window_bounds = array<i64: 2, 128>}]} {
    %c0 = arith.constant 0 : index
    %c0_0 = arith.constant 0 : index
    %0 = vector.load %arg1[%c0, %c0_0] : memref<3x128xf32, #tpu.memory_space<vmem>>, vector<1x128xf32>
    %c1 = arith.constant 1 : index
    %c0_1 = arith.constant 0 : index
    %1 = vector.load %arg1[%c1, %c0_1] : memref<3x128xf32, #tpu.memory_space<vmem>>, vector<1x128xf32>
    %c2 = arith.constant 2 : index
    %c0_2 = arith.constant 0 : index
    %2 = vector.load %arg1[%c2, %c0_2] : memref<3x128xf32, #tpu.memory_space<vmem>>, vector<1x128xf32>
    %cst = arith.constant 5.000000e-01 : f32
    %3 = vector.broadcast %cst : f32 to vector<1x128xf32>
    %4 = arith.cmpf ogt, %2, %3 : vector<1x128xf32>
    %c2_i32 = arith.constant 2 : i32
    %5 = arith.muli %arg0, %c2_i32 : i32
    %6 = tpu.iota {dimensions = array<i32: 0>} : vector<2x1xi32>
    %7 = vector.broadcast %5 : i32 to vector<2x1xi32>
    %8 = arith.addi %6, %7 : vector<2x1xi32>
    %c4_i32 = arith.constant 4 : i32
    %9 = vector.broadcast %c4_i32 : i32 to vector<2x1xi32>
    %10 = arith.muli %8, %9 : vector<2x1xi32>
    %11 = arith.sitofp %10 : vector<2x1xi32> to vector<2x1xf32>
    %12 = vector.broadcast %11 : vector<2x1xf32> to vector<2x128xf32>
    %13 = vector.broadcast %1 : vector<1x128xf32> to vector<2x128xf32>
    %14 = arith.addf %12, %13 : vector<2x128xf32>
    %15 = vector.broadcast %0 : vector<1x128xf32> to vector<2x128xf32>
    %16 = arith.mulf %14, %15 : vector<2x128xf32>
    %17 = math.cos %16 : vector<2x128xf32>
    %18 = math.sin %16 : vector<2x128xf32>
    %19 = vector.shape_cast %4 : vector<1x128xi1> to vector<1x128xi1>
    %20 = vector.broadcast %19 : vector<1x128xi1> to vector<2x128xi1>
    %21 = arith.select %20, %17, %18 : vector<2x128xi1>, vector<2x128xf32>
    %c0_3 = arith.constant 0 : index
    %c0_4 = arith.constant 0 : index
    %22 = vector.load %arg2[%c0_3, %c0_4] : memref<2x128xf32, #tpu.memory_space<vmem>>, vector<2x128xf32>
    tpu.vector_store %arg2[%c0_3, %c0_4], %21 {strides = array<i32>} : memref<2x128xf32, #tpu.memory_space<vmem>>, vector<2x128xf32>,
    return
  }
  func.func @transform_0(%arg0: i32) -> (i32, i32) {
    %c0_i32 = arith.constant 0 : i32
    %c0_i32_0 = arith.constant 0 : i32
    %c0_i32_1 = arith.constant 0 : i32
    return %c0_i32, %c0_i32_0 : i32, i32
  }
  func.func @transform_1(%arg0: i32) -> (i32, i32) {
    %c0_i32 = arith.constant 0 : i32
    %c0_i32_0 = arith.constant 0 : i32
    return %arg0, %c0_i32 : i32, i32
  }
}

</mosaic_0001>

<llo_original>
// kernel: tpu_custom_call.1
$region0: #{tpu_custom_call.1}
  #allocation0 [shape = 'u32[]', space=smem, size = 0x4, offset = 0x4, fixed_abs, tag = 'smem constant byte address 0x4 - core index']
  #allocation1 [shape = 'u32[144,128]{1,0:T(1,128)}', space=vmem, size = 0x12000, scoped, tag = 'internal scratch']
  %s0 = inlined_call_operand.hbm [shape: f32[3,128], index: 0, kind: input, shape index: {}]
  %s1 = inlined_call_operand.hbm [shape: f32[2,128], index: 1, kind: output, shape index: {}]
  %s2 = sld [smem:[#allocation0]]
  $region18: #{tpu_custom_call.1} parent=0
    _
  %s4 = ssub.s32 1, %s2
  %s5 = scalar_select 0, %s4, %s2
  $region1: #{tpu_custom_call.1} parent=0
    #allocation2 [shape = 'u8[2048]{0}', space=vmem, size = 0x800, scoped, tag = 'input window, operand 0, single buffered']
    #allocation3 [shape = 's32[1]{0}', space=sflag, size = 0x4, scoped, tag = 'scoped memory for tpu_custom_call.1']
    #allocation4 [shape = 's32[1]{0}', space=sflag, size = 0x4, scoped, tag = 'scoped memory for tpu_custom_call.1']
    #allocation5 [shape = 'u8[1024]{0}', space=vmem, size = 0x400, scoped, tag = 'output window, operand 0, single buffered']
    %6 = vsyncpa [#allocation3], 0
    %7 = vsyncpa [#allocation4], 0
    // Predicated region
    $region2: #{tpu_custom_call.1} parent=1 // pred_check
      _
    $region3: #{tpu_custom_call.1} parent=1 // pred_check_branch
      %9 = sbr.rel (0) target = $region5
    $region4: #{tpu_custom_call.1} parent=1 // pred_region
      %s11 = ssub.s32 64, 64
      %12 = vsyncadd [#allocation3], %s11
      %s14 = sshll.u32 [#allocation2], 4
      %s15 = int_to_ptr.vmem [resolvable:$true] %s14
      %17 = dma.hbm_to_vmem [thread:$0]  %s0, 64, %s15, [#allocation3]
    $region5: #{tpu_custom_call.1} parent=1 // pred_fallthru
      _
    // Predicated region
    $region6: #{tpu_custom_call.1} parent=1 // pred_check
      _
    $region7: #{tpu_custom_call.1} parent=1 // pred_check_branch
      %19 = sbr.rel (0) target = $region9
    $region8: #{tpu_custom_call.1} parent=1 // pred_region
      %20 = dma.done [#allocation3], 64
    $region9: #{tpu_custom_call.1} parent=1 // pred_fallthru
      _
    %v21 = vld [vmem:[#allocation2] sm:$0x1]
    %v22 = vld [vmem:[#allocation2 + $0x1] sm:$0x1]
    %v23 = vld [vmem:[#allocation2 + $0x2] sm:$0x1]
    %vm24 = vcmp.gt.f32.partialorder %v23, 0.5
    %s25 = smul.u32 0, 2
    %v26 = vlaneseq
    %v27 = vshrl.u32 %v26, 7
    %v28 = vstv %s25
    %v29 = vadd.s32 %v27, %v28
    %v30 = vmul.u32 %v29, 4
    %v31 = vcvt.s32.f32 %v30
    %v32 = vlaneseq
    %v33 = vshrl.u32 %v32, 7
    %v34 = vsub.s32 0, %v33
    %v35 = vrot.slane %v22, %v34
    %v36 = vadd.f32 %v31, %v35
    %v37 = vlaneseq
    %v38 = vshrl.u32 %v37, 7
    %v39 = vsub.s32 0, %v38
    %v40 = vrot.slane %v21, %v39
    %v41 = vmul.f32 %v36, %v40
    %v42 = vand.u32 2147483647, %v41
    %vm43 = vcmp.le.f32.partialorder %v42, 0.7853982
    %vm44 = vcmp.lt.s32.totalorder %v41, 0
    %v45 = vand.u32 %v41, 2139095040
    %v46 = vshrl.u32 %v45, 23
    %v47 = vsub.s32 %v46, 127
    %v48 = vand.u32 2147483647, %v41
    %v49 = vand.u32 %v48, 8388607
    %v50 = vor.u32 %v49, 8388608
    %v51 = vsub.s32 0, %v50
    %v52 = vadd.s32 %v47, 1
    %vm53 = vcmp.gt.s32.totalorder %v52, 0
    %v54 = vsel %vm53, %v52, 0
    %v55 = vshrl.u32 %v54, 5
    %v56 = vand.u32 %v54, 31
    %v57 = vsub.s32 32, %v56
    %v58 = vshrl.u32 683565275, %v57
    %v59 = vshll.u32 683565275, %v56
    %v60 = vshrl.u32 2475754826, %v57
    %v61 = vor.u32 %v59, %v60
    %v62 = vshll.u32 2475754826, %v56
    %v63 = vshrl.u32 2131351028, %v57
    %v64 = vor.u32 %v62, %v63
    %v65 = vshll.u32 2131351028, %v56
    %v66 = vshrl.u32 2102212464, %v57
    %v67 = vor.u32 %v65, %v66
    %v68 = vshll.u32 2102212464, %v56
    %v69 = vshrl.u32 920167782, %v57
    %v70 = vor.u32 %v68, %v69
    %v71 = vshll.u32 920167782, %v56
    %v72 = vshrl.u32 1326507024, %v57
    %v73 = vor.u32 %v71, %v72
    %vm74 = vcmp.lt.s32.totalorder %v55, 1
    %vm75 = vcmp.lt.s32.totalorder %v55, 2
    %vm76 = vcmp.lt.s32.totalorder %v55, 3
    %vm77 = vcmp.lt.s32.totalorder %v55, 4
    %v78 = vsel %vm74, %v58, %v61
    %v79 = vsel %vm77, %v67, 2102212464
    %v80 = vsel %vm76, %v64, %v79
    %v81 = vsel %vm75, %v78, %v80
    %v82 = vsel %vm74, %v61, %v64
    %v83 = vsel %vm77, %v70, 920167782
    %v84 = vsel %vm76, %v67, %v83
    %v85 = vsel %vm75, %v82, %v84
    %v86 = vsel %vm74, %v64, %v67
    %v87 = vsel %vm77, %v73, 1326507024
    %v88 = vsel %vm76, %v70, %v87
    %v89 = vsel %vm75, %v86, %v88
    %v90 = vshll.u32 %v50, 8
    %v91 = vmul.u32.u64.compose %v90, %v89
    %v92 = vextract.low.u32 %v91
    %v93 = vextract.high.u32 %v91
    %v94 = vmul.u32.u64.compose %v90, %v85
    %v95 = vextract.low.u32 %v94
    %v96 = vextract.high.u32 %v94
    %v97 = vmul.u32 %v90, %v81
    %v98 = vadd.s32 %v93, %v95
    %vm99 = vc.u32 %v93, %v95
    %v100 = vadd.s32 %v96, 1
    %v101 = vsel %vm99, %v100, %v96
    %v102 = vadd.s32 %v97, %v101
    %v103 = vadd.s32 %v102, 536870912
    %v104 = vshrl.u32 %v103, 30
    %v105 = vshll.u32 %v104, 30
    %v106 = vsub.s32 %v102, %v105
    %vm107 = vcmp.lt.s32.totalorder %v106, 0
    %v108 = vsub.s32 0, %v106
    %v109 = vsel %vm107, %v108, %v106
    %v110 = vclz %v109
    %v111 = vsub.s32 %v110, 2
    %vm112 = vcmp.gt.s32.totalorder 0, %v111
    %v113 = vsel %vm112, 0, %v111
    %v114 = vsub.s32 32, %v113
    %v115 = vshll.u32 %v106, %v113
    %v116 = vshrl.u32 %v98, %v114
    %v117 = vor.u32 %v115, %v116
    %v118 = vsub.s32 4294967266, %v113
    %v119 = vadd.s32 %v118, 127
    %v120 = vshll.u32 %v119, 23
    %v121 = vor.u32 4788187, %v120
    %v122 = vand.u32 2147483647, %v121
    %v124 = vcvt.s32.f32 %v117
    %v125 = vmul.f32 %v124, %v122
    %v126 = vxor.u32 %v125, 2147483648
    %v127 = vsel %vm44, %v126, %v125
    %v128 = vsub.s32 4, %v104
    %v129 = vsel %vm44, %v128, %v104
    %v130 = vsel %vm43, %v41, %v127
    %v131 = vsel %vm43, 0, %v129
    %v132 = vcosq.f32.pop %v130
    %v133 = vsinq.f32.pop %v130
    %vm134 = vweird.f32 %v41
    %v135 = vand.u32 %v131, 3
    %vm136 = vcmp.lt.s32.totalorder %v135, 2
    %vm137 = vcmp.eq.s32.totalorder %v135, 0
    %v138 = vxor.u32 %v133, 2147483648
    %v139 = vsel %vm137, %v132, %v138
    %vm140 = vcmp.eq.s32.totalorder %v135, 2
    %v141 = vxor.u32 %v132, 2147483648
    %v142 = vsel %vm140, %v141, %v133
    %v143 = vsel %vm136, %v139, %v142
    %v144 = vsel %vm134, nan, %v143
    %v145 = vand.u32 2147483647, %v41
    %vm146 = vcmp.le.f32.partialorder %v145, 0.7853982
    %vm147 = vcmp.lt.s32.totalorder %v41, 0
    %v148 = vand.u32 %v41, 2139095040
    %v149 = vshrl.u32 %v148, 23
    %v150 = vsub.s32 %v149, 127
    %v151 = vand.u32 2147483647, %v41
    %v152 = vand.u32 %v151, 8388607
    %v153 = vor.u32 %v152, 8388608
    %v154 = vsub.s32 0, %v153
    %v155 = vadd.s32 %v150, 1
    %vm156 = vcmp.gt.s32.totalorder %v155, 0
    %v157 = vsel %vm156, %v155, 0
    %v158 = vshrl.u32 %v157, 5
    %v159 = vand.u32 %v157, 31
    %v160 = vsub.s32 32, %v159
    %v161 = vshrl.u32 683565275, %v160
    %v162 = vshll.u32 683565275, %v159
    %v163 = vshrl.u32 2475754826, %v160
    %v164 = vor.u32 %v162, %v163
    %v165 = vshll.u32 2475754826, %v159
    %v166 = vshrl.u32 2131351028, %v160
    %v167 = vor.u32 %v165, %v166
    %v168 = vshll.u32 2131351028, %v159
    %v169 = vshrl.u32 2102212464, %v160
    %v170 = vor.u32 %v168, %v169
    %v171 = vshll.u32 2102212464, %v159
    %v172 = vshrl.u32 920167782, %v160
    %v173 = vor.u32 %v171, %v172
    %v174 = vshll.u32 920167782, %v159
    %v175 = vshrl.u32 1326507024, %v160
    %v176 = vor.u32 %v174, %v175
    %vm177 = vcmp.lt.s32.totalorder %v158, 1
    %vm178 = vcmp.lt.s32.totalorder %v158, 2
    %vm179 = vcmp.lt.s32.totalorder %v158, 3
    %vm180 = vcmp.lt.s32.totalorder %v158, 4
    %v181 = vsel %vm177, %v161, %v164
    %v182 = vsel %vm180, %v170, 2102212464
    %v183 = vsel %vm179, %v167, %v182
    %v184 = vsel %vm178, %v181, %v183
    %v185 = vsel %vm177, %v164, %v167
    %v186 = vsel %vm180, %v173, 920167782
    %v187 = vsel %vm179, %v170, %v186
    %v188 = vsel %vm178, %v185, %v187
    %v189 = vsel %vm177, %v167, %v170
    %v190 = vsel %vm180, %v176, 1326507024
    %v191 = vsel %vm179, %v173, %v190
    %v192 = vsel %vm178, %v189, %v191
    %v193 = vshll.u32 %v153, 8
    %v194 = vmul.u32.u64.compose %v193, %v192
    %v195 = vextract.low.u32 %v194
    %v196 = vextract.high.u32 %v194
    %v197 = vmul.u32.u64.compose %v193, %v188
    %v198 = vextract.low.u32 %v197
    %v199 = vextract.high.u32 %v197
    %v200 = vmul.u32 %v193, %v184
    %v201 = vadd.s32 %v196, %v198
    %vm202 = vc.u32 %v196, %v198
    %v203 = vadd.s32 %v199, 1
    %v204 = vsel %vm202, %v203, %v199
    %v205 = vadd.s32 %v200, %v204
    %v206 = vadd.s32 %v205, 536870912
    %v207 = vshrl.u32 %v206, 30
    %v208 = vshll.u32 %v207, 30
    %v209 = vsub.s32 %v205, %v208
    %vm210 = vcmp.lt.s32.totalorder %v209, 0
    %v211 = vsub.s32 0, %v209
    %v212 = vsel %vm210, %v211, %v209
    %v213 = vclz %v212
    %v214 = vsub.s32 %v213, 2
    %vm215 = vcmp.gt.s32.totalorder 0, %v214
    %v216 = vsel %vm215, 0, %v214
    %v217 = vsub.s32 32, %v216
    %v218 = vshll.u32 %v209, %v216
    %v219 = vshrl.u32 %v201, %v217
    %v220 = vor.u32 %v218, %v219
    %v221 = vsub.s32 4294967266, %v216
    %v222 = vadd.s32 %v221, 127
    %v223 = vshll.u32 %v222, 23
    %v224 = vor.u32 4788187, %v223
    %v225 = vand.u32 2147483647, %v224
    %v227 = vcvt.s32.f32 %v220
    %v228 = vmul.f32 %v227, %v225
    %v229 = vxor.u32 %v228, 2147483648
    %v230 = vsel %vm147, %v229, %v228
    %v231 = vsub.s32 4, %v207
    %v232 = vsel %vm147, %v231, %v207
    %v233 = vsel %vm146, %v41, %v230
    %v234 = vsel %vm146, 0, %v232
    %v235 = vcosq.f32.pop %v233
    %v236 = vsinq.f32.pop %v233
    %vm237 = vweird.f32 %v41
    %v238 = vadd.s32 %v234, 3
    %v239 = vand.u32 %v238, 3
    %vm240 = vcmp.lt.s32.totalorder %v239, 2
    %vm241 = vcmp.eq.s32.totalorder %v239, 0
    %v242 = vxor.u32 %v236, 2147483648
    %v243 = vsel %vm241, %v235, %v242
    %vm244 = vcmp.eq.s32.totalorder %v239, 2
    %v245 = vxor.u32 %v235, 2147483648
    %v246 = vsel %vm244, %v245, %v236
    %v247 = vsel %vm240, %v243, %v246
    %v248 = vsel %vm237, nan, %v247
    %v249 = vsel %vm24, 1, 0
    %v250 = vlaneseq
    %v251 = vshrl.u32 %v250, 7
    %v252 = vsub.s32 0, %v251
    %v253 = vrot.slane %v249, %v252
    %vm254 = vcmp.eq.s32.totalorder %v253, 1
    %v255 = vsel %vm254, %v144, %v248
    %256 = vst [vmem:[#allocation5] sm:$0x3] %v255
    // Predicated region
    $region10: #{tpu_custom_call.1} parent=1 // pred_check
      _
    $region11: #{tpu_custom_call.1} parent=1 // pred_check_branch
      %258 = sbr.rel (0) target = $region13
    $region12: #{tpu_custom_call.1} parent=1 // pred_region
      %s260 = ssub.s32 32, 32
      %261 = vsyncadd [#allocation4], %s260
      %s263 = sshll.u32 [#allocation5], 4
      %s264 = int_to_ptr.vmem [resolvable:$true] %s263
      %266 = dma.vmem_to_hbm [thread:$0]  %s264, 32, %s1, [#allocation4]
    $region13: #{tpu_custom_call.1} parent=1 // pred_fallthru
      _
    // Predicated region
    $region14: #{tpu_custom_call.1} parent=1 // pred_check
      _
    $region15: #{tpu_custom_call.1} parent=1 // pred_check_branch
      %268 = sbr.rel (0) target = $region17
    $region16: #{tpu_custom_call.1} parent=1 // pred_region
      %269 = dma.done [#allocation4], 32
    $region17: #{tpu_custom_call.1} parent=1 // pred_fallthru
      _
    %270 = vsyncpa [#allocation3], 1
    %271 = vsyncpa [#allocation4], 1

</llo_original>
